<compile_context>
chip_gen: v7x
topology: tpu7x:2x2x1
jax: 0.10.0
libtpu: 0.0.40
codegen_flags: <defaults>
</compile_context>

<pallas_src>
import jax
import jax.numpy as jnp
import numpy as np
from jax.experimental import pallas as pl
from jax.experimental.pallas import tpu as pltpu

LANE = 128  # TPU vreg lane width


def _round_up(n, m):
    return ((n + m - 1) // m) * m


# --------------------------------------------------------------------------- #
# Kernel
# --------------------------------------------------------------------------- #
def actor_kernel(x_ref, w1_ref, b1_ref, w2_ref, b2_ref, w3_ref, b3_ref,
                 scale_ref, bias_ref, o_ref):
    # Cast activations to bf16 at the MXU inputs; accumulate in f32.
    x = x_ref[...].astype(jnp.bfloat16)                              # (TB, obs_p)

    # fc1 + ReLU   (post-matmul math in f32 on the VPU)
    h1 = jnp.dot(x, w1_ref[...], preferred_element_type=jnp.float32)
    h1 = jnp.maximum(h1 + b1_ref[...], 0.0)                          # (TB, 256) f32

    # fc2 + ReLU
    h2 = jnp.dot(h1.astype(jnp.bfloat16), w2_ref[...],
                 preferred_element_type=jnp.float32)
    h2 = jnp.maximum(h2 + b2_ref[...], 0.0)                          # (TB, 256) f32

    # fc_mu + tanh  (tanh runs on the EUP -> effectively free slot)
    mu = jnp.dot(h2.astype(jnp.bfloat16), w3_ref[...],
                 preferred_element_type=jnp.float32)
    mu = jnp.tanh(mu + b3_ref[...])                                  # (TB, act_p) f32

    # Rescale to the action space.  Lane-dense (act_p % 128 == 0) store.
    o_ref[...] = mu * scale_ref[...] + bias_ref[...]


# --------------------------------------------------------------------------- #
# Wrapper
# --------------------------------------------------------------------------- #
def actor_forward(x, packed, *, batch_tile=None):
    """x: (B, obs_dim) f32.  packed: lane-padded params from pack_params()."""
    B, obs_dim = x.shape
    assert obs_dim == packed["obs_dim"], "x feature dim mismatch with params"
    obs_p = packed["w1"].shape[0]
    hidden = packed["w1"].shape[1]
    act_p = packed["w3"].shape[1]
    action_dim = packed["action_dim"]

    # ---- MXU-friendly batch tile: multiple of 8 rows, <= 256 rows ----------
    if batch_tile is None:
        tb = min(256, _round_up(B, 8))
        # Prefer >= 2 grid steps when the batch allows it (dual TC on v7x).
        if B > 128 and _round_up(B, tb) // tb < 2:
            tb = 128
    else:
        tb = int(batch_tile)
        assert tb % 8 == 0, "batch_tile must be a multiple of 8 (f32 sublane)"

    Bp = _round_up(B, tb)
    # Pad batch rows (so the grid tiles evenly) and feature cols (lane-dense,
    # matches the zero-padded weight rows).  Padded rows are sliced off below.
    if Bp != B or obs_p != obs_dim:
        x = jnp.pad(x, ((0, Bp - B), (0, obs_p - obs_dim)))
    grid = (Bp // tb,)

    def rep_spec(rows, cols):
        # Replicated blocks (weights/biases/scales): constant index_map keeps
        # them resident in VMEM across the whole batch grid.
        return pl.BlockSpec((rows, cols), lambda i: (0, 0))

    out = pl.pallas_call(
        actor_kernel,
        out_shape=jax.ShapeDtypeStruct((Bp, act_p), jnp.float32),
        grid_spec=pltpu.PrefetchScalarGridSpec(
            num_scalar_prefetch=0,
            grid=grid,
            in_specs=[
                pl.BlockSpec((tb, obs_p), lambda i: (i, 0)),     # x (f32)
                rep_spec(obs_p, hidden),                         # w1 (bf16)
                rep_spec(1, hidden),                             # b1 (f32)
                rep_spec(hidden, hidden),                        # w2 (bf16)
                rep_spec(1, hidden),                             # b2 (f32)
                rep_spec(hidden, act_p),                         # w3 (bf16)
                rep_spec(1, act_p),                              # b3 (f32)
                rep_spec(1, act_p),                              # action_scale
                rep_spec(1, act_p),                              # action_bias
            ],
            out_specs=pl.BlockSpec((tb, act_p), lambda i: (i, 0)),
        ),
        compiler_params=pltpu.CompilerParams(
            dimension_semantics=("parallel",),
            vmem_limit_bytes=32 * 1024 * 1024,
        ),
    )(x, packed["w1"], packed["b1"], packed["w2"], packed["b2"],
      packed["w3"], packed["b3"], packed["action_scale"], packed["action_bias"])

    return out[:B, :action_dim]


# --------------------------------------------------------------------------- #
# Parameter construction / packing
# --------------------------------------------------------------------------- #
def init_params(key, obs_dim, action_dim, hidden=256):
    """nn.Linear-style init U(-1/sqrt(fan_in), 1/sqrt(fan_in)).
    Weights stored (in, out) in bf16 for the kernel's x @ W convention;
    biases / action scale / bias stay f32 (1, out) rows."""
    ks = jax.random.split(key, 6)

    def linear(kw, kb, fan_in, fan_out):
        bound = 1.0 / np.sqrt(fan_in)
        w = jax.random.uniform(kw, (fan_in, fan_out), jnp.float32, -bound, bound)
        b = jax.random.uniform(kb, (1, fan_out), jnp.float32, -bound, bound)
        return w.astype(jnp.bfloat16), b

    w1, b1 = linear(ks[0], ks[1], obs_dim, hidden)
    w2, b2 = linear(ks[2], ks[3], hidden, hidden)
    w3, b3 = linear(ks[4], ks[5], hidden, action_dim)

    # Synthetic Box action space: low = -2, high = 2  =>  scale = 2, bias = 0
    high = 2.0 * jnp.ones((1, action_dim), jnp.float32)
    low = -2.0 * jnp.ones((1, action_dim), jnp.float32)
    action_scale = (high - low) / 2.0
    action_bias = (high + low) / 2.0

    return {"w1": w1, "b1": b1, "w2": w2, "b2": b2, "w3": w3, "b3": b3,
            "action_scale": action_scale, "action_bias": action_bias}


def pack_params(p):
    """One-time lane padding (obs_dim / action_dim -> multiples of 128).
    Padded weight rows/cols are zero => identical numerics; padded output
    columns are sliced off in the wrapper."""
    obs_dim, hidden = p["w1"].shape
    action_dim = p["w3"].shape[1]
    obs_p = _round_up(obs_dim, LANE)
    act_p = _round_up(action_dim, LANE)

    packed = {
        "w1": jnp.pad(p["w1"], ((0, obs_p - obs_dim), (0, 0))),
        "b1": p["b1"],
        "w2": p["w2"],
        "b2": p["b2"],
        "w3": jnp.pad(p["w3"], ((0, 0), (0, act_p - action_dim))),
        "b3": jnp.pad(p["b3"], ((0, 0), (0, act_p - action_dim))),
        "action_scale": jnp.pad(p["action_scale"],
                                ((0, 0), (0, act_p - action_dim))),
        "action_bias": jnp.pad(p["action_bias"],
                               ((0, 0), (0, act_p - action_dim))),
        "obs_dim": obs_dim,
        "action_dim": action_dim,
    }
    return packed


# --------------------------------------------------------------------------- #
# Pure-JAX reference
# --------------------------------------------------------------------------- #
def actor_ref(x, p):
    """Pure-JAX reference with the same bf16-inputs / f32-accumulate recipe."""
    bf16 = jnp.bfloat16
    h1 = jnp.maximum(
        jnp.dot(x.astype(bf16), p["w1"], preferred_element_type=jnp.float32)
        + p["b1"], 0.0)
    h2 = jnp.maximum(
        jnp.dot(h1.astype(bf16), p["w2"], preferred_element_type=jnp.float32)
        + p["b2"], 0.0)
    mu = jnp.tanh(
        jnp.dot(h2.astype(bf16), p["w3"], preferred_element_type=jnp.float32)
        + p["b3"])
    return mu * p["action_scale"] + p["action_bias"]


# --------------------------------------------------------------------------- #
# Test
# --------------------------------------------------------------------------- #
if __name__ == "__main__":
    key = jax.random.PRNGKey(0)
    k_params, k_x = jax.random.split(key)

    # MuJoCo-like shapes (HalfCheetah: 17 obs, 6 actions) -- also exercises the
    # lane padding since neither dim is a multiple of 128.
    B, obs_dim, action_dim = 20, 17, 6
    params = init_params(k_params, obs_dim, action_dim, hidden=256)
    packed = pack_params(params)
    x = jax.random.normal(k_x, (B, obs_dim), jnp.float32)

    ref = actor_ref(x, params)

    # Default tiling (single padded tile covering the batch).
    out = jax.block_until_ready(actor_forward(x, packed))
    assert out.shape == (B, action_dim)
    np.testing.assert_allclose(np.asarray(out), np.asarray(ref),
                               rtol=2e-2, atol=2e-2)

    # Explicit small tile: exercises batch padding + a multi-step parallel grid.
    out_tiled = jax.block_until_ready(actor_forward(x, packed, batch_tile=8))
    np.testing.assert_allclose(np.asarray(out_tiled), np.asarray(ref),
                               rtol=2e-2, atol=2e-2)

    print("KERNEL_OK")
</pallas_src>

<mosaic_0001>
module attributes {stable_mosaic.version = 11 : i64} {
  func.func @actor_kernel(%arg0: i32, %arg1: memref<24x128xf32, #tpu.memory_space<vmem>>, %arg2: memref<128x256xbf16, #tpu.memory_space<vmem>>, %arg3: memref<1x256xf32, #tpu.memory_space<vmem>>, %arg4: memref<256x256xbf16, #tpu.memory_space<vmem>>, %arg5: memref<1x256xf32, #tpu.memory_space<vmem>>, %arg6: memref<256x128xbf16, #tpu.memory_space<vmem>>, %arg7: memref<1x128xf32, #tpu.memory_space<vmem>>, %arg8: memref<1x128xf32, #tpu.memory_space<vmem>>, %arg9: memref<1x128xf32, #tpu.memory_space<vmem>>, %arg10: memref<24x128xf32, #tpu.memory_space<vmem>>) attributes {dimension_semantics = [#tpu.dimension_semantics<parallel>], iteration_bounds = array<i64: 1>, scalar_prefetch = 0 : i64, scratch_operands = 0 : i64, tpu.core_type = #tpu.core_type<tc>, window_params = [{transform_indices = @transform_0, window_bounds = array<i64: 24, 128>}, {pipeline_mode = #tpu.pipeline_mode<synchronous>, transform_indices = @transform_1, window_bounds = array<i64: 128, 256>}, {pipeline_mode = #tpu.pipeline_mode<synchronous>, transform_indices = @transform_2, window_bounds = array<i64: 1, 256>}, {pipeline_mode = #tpu.pipeline_mode<synchronous>, transform_indices = @transform_3, window_bounds = array<i64: 256, 256>}, {pipeline_mode = #tpu.pipeline_mode<synchronous>, transform_indices = @transform_4, window_bounds = array<i64: 1, 256>}, {pipeline_mode = #tpu.pipeline_mode<synchronous>, transform_indices = @transform_5, window_bounds = array<i64: 256, 128>}, {pipeline_mode = #tpu.pipeline_mode<synchronous>, transform_indices = @transform_6, window_bounds = array<i64: 1, 128>}, {pipeline_mode = #tpu.pipeline_mode<synchronous>, transform_indices = @transform_7, window_bounds = array<i64: 1, 128>}, {pipeline_mode = #tpu.pipeline_mode<synchronous>, transform_indices = @transform_8, window_bounds = array<i64: 1, 128>}, {transform_indices = @transform_9, window_bounds = array<i64: 24, 128>}]} {
    %c0 = arith.constant 0 : index
    %c0_0 = arith.constant 0 : index
    %0 = vector.load %arg1[%c0, %c0_0] : memref<24x128xf32, #tpu.memory_space<vmem>>, vector<24x128xf32>
    %1 = arith.truncf %0 : vector<24x128xf32> to vector<24x128xbf16>
    %c0_1 = arith.constant 0 : index
    %c0_2 = arith.constant 0 : index
    %2 = vector.load %arg2[%c0_1, %c0_2] : memref<128x256xbf16, #tpu.memory_space<vmem>>, vector<128x256xbf16>
    %cst = arith.constant dense<0.000000e+00> : vector<24x256xf32>
    %3 = tpu.matmul %1, %2, %cst {dimension_numbers = #tpu.dot_dimension_numbers<[1], [0], [0], [1], [0, 0, 1, 1], [], []>} : vector<24x128xbf16>, vector<128x256xbf16>, vector<24x256xf32> -> vector<24x256xf32>
    %c0_3 = arith.constant 0 : index
    %c0_4 = arith.constant 0 : index
    %4 = vector.load %arg3[%c0_3, %c0_4] : memref<1x256xf32, #tpu.memory_space<vmem>>, vector<1x256xf32>
    %5 = vector.broadcast %4 : vector<1x256xf32> to vector<24x256xf32>
    %6 = arith.addf %3, %5 : vector<24x256xf32>
    %cst_5 = arith.constant 0.000000e+00 : f32
    %7 = vector.broadcast %cst_5 : f32 to vector<24x256xf32>
    %8 = arith.maximumf %6, %7 : vector<24x256xf32>
    %9 = arith.truncf %8 : vector<24x256xf32> to vector<24x256xbf16>
    %c0_6 = arith.constant 0 : index
    %c0_7 = arith.constant 0 : index
    %10 = vector.load %arg4[%c0_6, %c0_7] : memref<256x256xbf16, #tpu.memory_space<vmem>>, vector<256x256xbf16>
    %cst_8 = arith.constant dense<0.000000e+00> : vector<24x256xf32>
    %11 = tpu.matmul %9, %10, %cst_8 {dimension_numbers = #tpu.dot_dimension_numbers<[1], [0], [0], [1], [0, 0, 1, 1], [], []>} : vector<24x256xbf16>, vector<256x256xbf16>, vector<24x256xf32> -> vector<24x256xf32>
    %c0_9 = arith.constant 0 : index
    %c0_10 = arith.constant 0 : index
    %12 = vector.load %arg5[%c0_9, %c0_10] : memref<1x256xf32, #tpu.memory_space<vmem>>, vector<1x256xf32>
    %13 = vector.broadcast %12 : vector<1x256xf32> to vector<24x256xf32>
    %14 = arith.addf %11, %13 : vector<24x256xf32>
    %cst_11 = arith.constant 0.000000e+00 : f32
    %15 = vector.broadcast %cst_11 : f32 to vector<24x256xf32>
    %16 = arith.maximumf %14, %15 : vector<24x256xf32>
    %17 = arith.truncf %16 : vector<24x256xf32> to vector<24x256xbf16>
    %c0_12 = arith.constant 0 : index
    %c0_13 = arith.constant 0 : index
    %18 = vector.load %arg6[%c0_12, %c0_13] : memref<256x128xbf16, #tpu.memory_space<vmem>>, vector<256x128xbf16>
    %cst_14 = arith.constant dense<0.000000e+00> : vector<24x128xf32>
    %19 = tpu.matmul %17, %18, %cst_14 {dimension_numbers = #tpu.dot_dimension_numbers<[1], [0], [0], [1], [0, 0, 1, 1], [], []>} : vector<24x256xbf16>, vector<256x128xbf16>, vector<24x128xf32> -> vector<24x128xf32>
    %c0_15 = arith.constant 0 : index
    %c0_16 = arith.constant 0 : index
    %20 = vector.load %arg7[%c0_15, %c0_16] : memref<1x128xf32, #tpu.memory_space<vmem>>, vector<1x128xf32>
    %21 = vector.broadcast %20 : vector<1x128xf32> to vector<24x128xf32>
    %22 = arith.addf %19, %21 : vector<24x128xf32>
    %23 = math.tanh %22 : vector<24x128xf32>
    %c0_17 = arith.constant 0 : index
    %c0_18 = arith.constant 0 : index
    %24 = vector.load %arg8[%c0_17, %c0_18] : memref<1x128xf32, #tpu.memory_space<vmem>>, vector<1x128xf32>
    %25 = vector.broadcast %24 : vector<1x128xf32> to vector<24x128xf32>
    %26 = arith.mulf %23, %25 : vector<24x128xf32>
    %c0_19 = arith.constant 0 : index
    %c0_20 = arith.constant 0 : index
    %27 = vector.load %arg9[%c0_19, %c0_20] : memref<1x128xf32, #tpu.memory_space<vmem>>, vector<1x128xf32>
    %28 = vector.broadcast %27 : vector<1x128xf32> to vector<24x128xf32>
    %29 = arith.addf %26, %28 : vector<24x128xf32>
    %c0_21 = arith.constant 0 : index
    %c0_22 = arith.constant 0 : index
    %30 = vector.load %arg10[%c0_21, %c0_22] : memref<24x128xf32, #tpu.memory_space<vmem>>, vector<24x128xf32>
    tpu.vector_store %arg10[%c0_21, %c0_22], %29 {strides = array<i32>} : memref<24x128xf32, #tpu.memory_space<vmem>>, vector<24x128xf32>,
    return
  }
  func.func @transform_0(%arg0: i32) -> (i32, i32) {
    %c0_i32 = arith.constant 0 : i32
    %c0_i32_0 = arith.constant 0 : i32
    return %arg0, %c0_i32 : i32, i32
  }
  func.func @transform_1(%arg0: i32) -> (i32, i32) {
    %c0_i32 = arith.constant 0 : i32
    %c0_i32_0 = arith.constant 0 : i32
    %c0_i32_1 = arith.constant 0 : i32
    return %c0_i32, %c0_i32_0 : i32, i32
  }
  func.func @transform_2(%arg0: i32) -> (i32, i32) {
    %c0_i32 = arith.constant 0 : i32
    %c0_i32_0 = arith.constant 0 : i32
    %c0_i32_1 = arith.constant 0 : i32
    return %c0_i32, %c0_i32_0 : i32, i32
  }
  func.func @transform_3(%arg0: i32) -> (i32, i32) {
    %c0_i32 = arith.constant 0 : i32
    %c0_i32_0 = arith.constant 0 : i32
    %c0_i32_1 = arith.constant 0 : i32
    return %c0_i32, %c0_i32_0 : i32, i32
  }
  func.func @transform_4(%arg0: i32) -> (i32, i32) {
    %c0_i32 = arith.constant 0 : i32
    %c0_i32_0 = arith.constant 0 : i32
    %c0_i32_1 = arith.constant 0 : i32
    return %c0_i32, %c0_i32_0 : i32, i32
  }
  func.func @transform_5(%arg0: i32) -> (i32, i32) {
    %c0_i32 = arith.constant 0 : i32
    %c0_i32_0 = arith.constant 0 : i32
    %c0_i32_1 = arith.constant 0 : i32
    return %c0_i32, %c0_i32_0 : i32, i32
  }
  func.func @transform_6(%arg0: i32) -> (i32, i32) {
    %c0_i32 = arith.constant 0 : i32
    %c0_i32_0 = arith.constant 0 : i32
    %c0_i32_1 = arith.constant 0 : i32
    return %c0_i32, %c0_i32_0 : i32, i32
  }
  func.func @transform_7(%arg0: i32) -> (i32, i32) {
    %c0_i32 = arith.constant 0 : i32
    %c0_i32_0 = arith.constant 0 : i32
    %c0_i32_1 = arith.constant 0 : i32
    return %c0_i32, %c0_i32_0 : i32, i32
  }
  func.func @transform_8(%arg0: i32) -> (i32, i32) {
    %c0_i32 = arith.constant 0 : i32
    %c0_i32_0 = arith.constant 0 : i32
    %c0_i32_1 = arith.constant 0 : i32
    return %c0_i32, %c0_i32_0 : i32, i32
  }
  func.func @transform_9(%arg0: i32) -> (i32, i32) {
    %c0_i32 = arith.constant 0 : i32
    %c0_i32_0 = arith.constant 0 : i32
    return %arg0, %c0_i32 : i32, i32
  }
}

</mosaic_0001>

<llo_original>
// kernel: tpu_custom_call.1
$region0: #{tpu_custom_call.1}
  #allocation0 [shape = 'u32[]', space=smem, size = 0x4, offset = 0x4, fixed_abs, tag = 'smem constant byte address 0x4 - core index']
  #allocation1 [shape = 'u32[144,128]{1,0:T(1,128)}', space=vmem, size = 0x12000, scoped, tag = 'internal scratch']
  %s0 = inlined_call_operand.hbm [shape: f32[24,128], index: 0, kind: input, shape index: {}]
  %s1 = inlined_call_operand.hbm [shape: bf16[128,256], index: 1, kind: input, shape index: {}]
  %s2 = inlined_call_operand.vmem [shape: f32[1,256], index: 2, kind: input, shape index: {}]
  %s3 = inlined_call_operand.hbm [shape: bf16[256,256], index: 3, kind: input, shape index: {}]
  %s4 = inlined_call_operand.vmem [shape: f32[1,256], index: 4, kind: input, shape index: {}]
  %s5 = inlined_call_operand.hbm [shape: bf16[256,128], index: 5, kind: input, shape index: {}]
  %s6 = inlined_call_operand.vmem [shape: f32[1,128], index: 6, kind: input, shape index: {}]
  %s7 = inlined_call_operand.vmem [shape: f32[1,128], index: 7, kind: input, shape index: {}]
  %s8 = inlined_call_operand.vmem [shape: f32[1,128], index: 8, kind: input, shape index: {}]
  %s9 = inlined_call_operand.hbm [shape: f32[24,128], index: 9, kind: output, shape index: {}]
  %s10 = sld [smem:[#allocation0]]
  $region62: #{tpu_custom_call.1} parent=0
    _
  %s12 = ssub.s32 1, %s10
  %s13 = scalar_select 0, %s12, %s10
  $region1: #{tpu_custom_call.1} parent=0
    #allocation2 [shape = 'u8[12288]{0}', space=vmem, size = 0x3000, scoped, tag = 'input window, operand 0, single buffered']
    #allocation3 [shape = 's32[1]{0}', space=sflag, size = 0x4, scoped, tag = 'scoped memory for tpu_custom_call.1']
    #allocation4 [shape = 's32[1]{0}', space=sflag, size = 0x4, scoped, tag = 'scoped memory for tpu_custom_call.1']
    #allocation5 [shape = 'u8[65536]{0}', space=vmem, size = 0x10000, scoped, tag = 'input window, operand 1, single buffered']
    #allocation6 [shape = 's32[1]{0}', space=sflag, size = 0x4, scoped, tag = 'scoped memory for tpu_custom_call.1']
    #allocation7 [shape = 'u8[131072]{0}', space=vmem, size = 0x20000, scoped, tag = 'input window, operand 3, single buffered']
    #allocation8 [shape = 'u8[65536]{0}', space=vmem, size = 0x10000, scoped, tag = 'input window, operand 5, single buffered']
    #allocation9 [shape = 's32[1]{0}', space=sflag, size = 0x4, scoped, tag = 'scoped memory for tpu_custom_call.1']
    #allocation10 [shape = 'u8[12288]{0}', space=vmem, size = 0x3000, scoped, tag = 'output window, operand 0, single buffered']
    %14 = vsyncpa [#allocation3], 0
    %15 = vsyncpa [#allocation6], 0
    %16 = vsyncpa [#allocation9], 0
    %17 = vsyncpa [#allocation4], 0
    // Predicated region
    $region2: #{tpu_custom_call.1} parent=1 // pred_check
      _
    $region3: #{tpu_custom_call.1} parent=1 // pred_check_branch
      %19 = sbr.rel (0) target = $region5
    $region4: #{tpu_custom_call.1} parent=1 // pred_region
      %s21 = ssub.s32 384, 384
      %22 = vsyncadd [#allocation3], %s21
      %s23 = sshll.u32 [#allocation2], 4
      %s24 = int_to_ptr.vmem [resolvable:$true] %s23
      %29 = dma.hbm_to_vmem [thread:$0]  %s0, 384, %s24, [#allocation3], 128, 128, 8
    $region5: #{tpu_custom_call.1} parent=1 // pred_fallthru
      _
    // Predicated region
    $region6: #{tpu_custom_call.1} parent=1 // pred_check
      _
    $region7: #{tpu_custom_call.1} parent=1 // pred_check_branch
      %31 = sbr.rel (0) target = $region9
    $region8: #{tpu_custom_call.1} parent=1 // pred_region
      %s33 = ssub.s32 2048, 2048
      %34 = vsyncadd [#allocation6], %s33
      %s35 = sshll.u32 [#allocation5], 4
      %s36 = int_to_ptr.vmem [resolvable:$true] %s35
      %41 = dma.hbm_to_vmem [thread:$0]  %s1, 2048, %s36, [#allocation6], 128, 128, 8
    $region9: #{tpu_custom_call.1} parent=1 // pred_fallthru
      _
    // Predicated region
    $region10: #{tpu_custom_call.1} parent=1 // pred_check
      _
    $region11: #{tpu_custom_call.1} parent=1 // pred_check_branch
      %43 = sbr.rel (0) target = $region13
    $region12: #{tpu_custom_call.1} parent=1 // pred_region
      _
    $region13: #{tpu_custom_call.1} parent=1 // pred_fallthru
      _
    // Predicated region
    $region14: #{tpu_custom_call.1} parent=1 // pred_check
      _
    $region15: #{tpu_custom_call.1} parent=1 // pred_check_branch
      %45 = sbr.rel (0) target = $region17
    $region16: #{tpu_custom_call.1} parent=1 // pred_region
      %s47 = ssub.s32 4096, 4096
      %48 = vsyncadd [#allocation6], %s47
      %s49 = sshll.u32 [#allocation7], 4
      %s50 = int_to_ptr.vmem [resolvable:$true] %s49
      %55 = dma.hbm_to_vmem [thread:$0]  %s3, 4096, %s50, [#allocation6], 128, 128, 8
    $region17: #{tpu_custom_call.1} parent=1 // pred_fallthru
      _
    // Predicated region
    $region18: #{tpu_custom_call.1} parent=1 // pred_check
      _
    $region19: #{tpu_custom_call.1} parent=1 // pred_check_branch
      %57 = sbr.rel (0) target = $region21
    $region20: #{tpu_custom_call.1} parent=1 // pred_region
      _
    $region21: #{tpu_custom_call.1} parent=1 // pred_fallthru
      _
    // Predicated region
    $region22: #{tpu_custom_call.1} parent=1 // pred_check
      _
    $region23: #{tpu_custom_call.1} parent=1 // pred_check_branch
      %59 = sbr.rel (0) target = $region25
    $region24: #{tpu_custom_call.1} parent=1 // pred_region
      %s61 = ssub.s32 2048, 2048
      %62 = vsyncadd [#allocation9], %s61
      %s63 = sshll.u32 [#allocation8], 4
      %s64 = int_to_ptr.vmem [resolvable:$true] %s63
      %69 = dma.hbm_to_vmem [thread:$0]  %s5, 2048, %s64, [#allocation9], 64, 64, 4
    $region25: #{tpu_custom_call.1} parent=1 // pred_fallthru
      _
    // Predicated region
    $region26: #{tpu_custom_call.1} parent=1 // pred_check
      _
    $region27: #{tpu_custom_call.1} parent=1 // pred_check_branch
      %71 = sbr.rel (0) target = $region29
    $region28: #{tpu_custom_call.1} parent=1 // pred_region
      _
    $region29: #{tpu_custom_call.1} parent=1 // pred_fallthru
      _
    // Predicated region
    $region30: #{tpu_custom_call.1} parent=1 // pred_check
      _
    $region31: #{tpu_custom_call.1} parent=1 // pred_check_branch
      %73 = sbr.rel (0) target = $region33
    $region32: #{tpu_custom_call.1} parent=1 // pred_region
      _
    $region33: #{tpu_custom_call.1} parent=1 // pred_fallthru
      _
    // Predicated region
    $region34: #{tpu_custom_call.1} parent=1 // pred_check
      _
    $region35: #{tpu_custom_call.1} parent=1 // pred_check_branch
      %75 = sbr.rel (0) target = $region37
    $region36: #{tpu_custom_call.1} parent=1 // pred_region
      _
    $region37: #{tpu_custom_call.1} parent=1 // pred_fallthru
      _
    // Predicated region
    $region38: #{tpu_custom_call.1} parent=1 // pred_check
      _
    $region39: #{tpu_custom_call.1} parent=1 // pred_check_branch
      %77 = sbr.rel (0) target = $region41
    $region40: #{tpu_custom_call.1} parent=1 // pred_region
      %78 = dma.done [#allocation3], 384
    $region41: #{tpu_custom_call.1} parent=1 // pred_fallthru
      _
    // Predicated region
    $region42: #{tpu_custom_call.1} parent=1 // pred_check
      _
    $region43: #{tpu_custom_call.1} parent=1 // pred_check_branch
      %80 = sbr.rel (0) target = $region45
    $region44: #{tpu_custom_call.1} parent=1 // pred_region
      %81 = dma.done [#allocation6], 2048
    $region45: #{tpu_custom_call.1} parent=1 // pred_fallthru
      _
    // Predicated region
    $region46: #{tpu_custom_call.1} parent=1 // pred_check
      _
    $region47: #{tpu_custom_call.1} parent=1 // pred_check_branch
      %83 = sbr.rel (0) target = $region49
    $region48: #{tpu_custom_call.1} parent=1 // pred_region
      %84 = dma.done [#allocation6], 4096
    $region49: #{tpu_custom_call.1} parent=1 // pred_fallthru
      _
    // Predicated region
    $region50: #{tpu_custom_call.1} parent=1 // pred_check
      _
    $region51: #{tpu_custom_call.1} parent=1 // pred_check_branch
      %86 = sbr.rel (0) target = $region53
    $region52: #{tpu_custom_call.1} parent=1 // pred_region
      %87 = dma.done [#allocation9], 2048
    $region53: #{tpu_custom_call.1} parent=1 // pred_fallthru
      _
    %v89 = vld [vmem:[#allocation2] sm:$0xff]
    %v90 = vld [vmem:[#allocation2 + $0x8] sm:$0xff]
    %v91 = vld [vmem:[#allocation2 + $0x10] sm:$0xff]
    %v92 = vpack.c.bf16 %v90, %v89
    %v93 = vpack.c.bf16 %v91, %v91
    %v94 = vld [vmem:[#allocation5] sm:$0xff]
    %v95 = vld [vmem:[#allocation5 + $0x8] sm:$0xff]
    %v96 = vld [vmem:[#allocation5 + $0x10] sm:$0xff]
    %v97 = vld [vmem:[#allocation5 + $0x18] sm:$0xff]
    %v98 = vld [vmem:[#allocation5 + $0x20] sm:$0xff]
    %v99 = vld [vmem:[#allocation5 + $0x28] sm:$0xff]
    %v100 = vld [vmem:[#allocation5 + $0x30] sm:$0xff]
    %v101 = vld [vmem:[#allocation5 + $0x38] sm:$0xff]
    %v102 = vld [vmem:[#allocation5 + $0x40] sm:$0xff]
    %v103 = vld [vmem:[#allocation5 + $0x48] sm:$0xff]
    %v104 = vld [vmem:[#allocation5 + $0x50] sm:$0xff]
    %v105 = vld [vmem:[#allocation5 + $0x58] sm:$0xff]
    %v106 = vld [vmem:[#allocation5 + $0x60] sm:$0xff]
    %v107 = vld [vmem:[#allocation5 + $0x68] sm:$0xff]
    %v108 = vld [vmem:[#allocation5 + $0x70] sm:$0xff]
    %v109 = vld [vmem:[#allocation5 + $0x78] sm:$0xff]
    %v110 = vld [vmem:[%s2] sm:$0x3]
    %v112 = vlaneseq
    %v113 = vshrl.u32 %v112, 7
    %v114 = vsub.s32 0, %v113
    %v115 = vrot.slane %v110, %v114
    %v116 = vlaneseq
    %v117 = vshrl.u32 %v116, 7
    %v118 = vsub.s32 1, %v117
    %v119 = vrot.slane %v110, %v118
    %v138 = vunpack.c.l.b16 %v94
    %v139 = vunpack.c.h.b16 %v94
    %v140 = vunpack.c.l.b16 %v95
    %v141 = vunpack.c.h.b16 %v95
    %v142 = vunpack.c.l.b16 %v96
    %v143 = vunpack.c.h.b16 %v96
    %v144 = vunpack.c.l.b16 %v97
    %v145 = vunpack.c.h.b16 %v97
    %v146 = vunpack.c.l.b16 %v98
    %v147 = vunpack.c.h.b16 %v98
    %v148 = vunpack.c.l.b16 %v99
    %v149 = vunpack.c.h.b16 %v99
    %v150 = vunpack.c.l.b16 %v100
    %v151 = vunpack.c.h.b16 %v100
    %v152 = vunpack.c.l.b16 %v101
    %v153 = vunpack.c.h.b16 %v101
    %v154 = vunpack.c.l.b16 %v102
    %v155 = vunpack.c.h.b16 %v102
    %v156 = vunpack.c.l.b16 %v103
    %v157 = vunpack.c.h.b16 %v103
    %v158 = vunpack.c.l.b16 %v104
    %v159 = vunpack.c.h.b16 %v104
    %v160 = vunpack.c.l.b16 %v105
    %v161 = vunpack.c.h.b16 %v105
    %v162 = vunpack.c.l.b16 %v106
    %v163 = vunpack.c.h.b16 %v106
    %v164 = vunpack.c.l.b16 %v107
    %v165 = vunpack.c.h.b16 %v107
    %v166 = vunpack.c.l.b16 %v108
    %v167 = vunpack.c.h.b16 %v108
    %v168 = vunpack.c.l.b16 %v109
    %v169 = vunpack.c.h.b16 %v109
    %v170 = vpack.c.b16 %v140, %v138
    %v171 = vpack.c.b16 %v141, %v139
    %v172 = vpack.c.b16 %v144, %v142
    %v173 = vpack.c.b16 %v145, %v143
    %v174 = vpack.c.b16 %v148, %v146
    %v175 = vpack.c.b16 %v149, %v147
    %v176 = vpack.c.b16 %v152, %v150
    %v177 = vpack.c.b16 %v153, %v151
    %v178 = vpack.c.b16 %v156, %v154
    %v179 = vpack.c.b16 %v157, %v155
    %v180 = vpack.c.b16 %v160, %v158
    %v181 = vpack.c.b16 %v161, %v159
    %v182 = vpack.c.b16 %v164, %v162
    %v183 = vpack.c.b16 %v165, %v163
    %v184 = vpack.c.b16 %v168, %v166
    %v185 = vpack.c.b16 %v169, %v167
    %202 = vmatprep.subr.bf16.mxu0 %v171
    %203 = vmatpush1.bf16.msra.mxu0 %v170
    %204 = vmatprep.subr.bf16.mxu0 %v173
    %205 = vmatpush1.bf16.msra.mxu0 %v172
    %206 = vmatprep.subr.bf16.mxu0 %v175
    %207 = vmatpush1.bf16.msra.mxu0 %v174
    %208 = vmatprep.subr.bf16.mxu0 %v177
    %209 = vmatpush1.bf16.msra.mxu0 %v176
    %210 = vmatprep.subr.bf16.mxu0 %v179
    %211 = vmatpush1.bf16.msra.mxu0 %v178
    %212 = vmatprep.subr.bf16.mxu0 %v181
    %213 = vmatpush1.bf16.msra.mxu0 %v180
    %214 = vmatprep.subr.bf16.mxu0 %v183
    %215 = vmatpush1.bf16.msra.mxu0 %v182
    %216 = vmatprep.subr.bf16.mxu0 %v185
    %217 = vmatpush1.bf16.msra.mxu0 %v184
    %218 = vmatprep.subr.bf16.mxu0 0
    %219 = vmatpush1.bf16.msra.mxu0 0
    %220 = vmatprep.subr.bf16.mxu0 0
    %221 = vmatpush1.bf16.msra.mxu0 0
    %222 = vmatprep.subr.bf16.mxu0 0
    %223 = vmatpush1.bf16.msra.mxu0 0
    %224 = vmatprep.subr.bf16.mxu0 0
    %225 = vmatpush1.bf16.msra.mxu0 0
    %226 = vmatprep.subr.bf16.mxu0 0
    %227 = vmatpush1.bf16.msra.mxu0 0
    %228 = vmatprep.subr.bf16.mxu0 0
    %229 = vmatpush1.bf16.msra.mxu0 0
    %230 = vmatprep.subr.bf16.mxu0 0
    %231 = vmatpush1.bf16.msra.mxu0 0
    %232 = vmatprep.subr.bf16.mxu0 0
    %233 = vmatpush1.bf16.msra.mxu0 0
    %234 = vmatprep.mubr.bf16.mxu0 0
    %235 = vmatmul.mubr.bf16.gmra.mrb[0].mxu0 %v92
    %v236 = vpop.f32.mrb[0].mxu0
    %v237 = vadd.f32 %v115, %v236
    %v238 = vpop.f32.mrb[0].mxu0
    %v239 = vadd.f32 %v119, %v238
    %v240 = vpop.f32.mrb[0].mxu0
    %v241 = vadd.f32 %v115, %v240
    %v242 = vpop.f32.mrb[0].mxu0
    %v243 = vadd.f32 %v119, %v242
    %244 = vmatprep.mubr.bf16.mxu0 0
    %245 = vmatmul.mubr.bf16.gmra.mrb[0].mxu0 %v93
    %v246 = vpop.f32.mrb[0].mxu0
    %v247 = vadd.f32 %v115, %v246
    %v248 = vpop.f32.mrb[0].mxu0
    %v249 = vadd.f32 %v119, %v248
    %v250 = vpop.f32.mrb[0].mxu0
    %v251 = vpop.f32.mrb[0].mxu0
    %252 = vdwg.mxu0
    %v253 = vmax.f32 %v237, 0.0
    %v254 = vmax.f32 %v239, 0.0
    %v255 = vmax.f32 %v241, 0.0
    %v256 = vmax.f32 %v243, 0.0
    %v257 = vmax.f32 %v247, 0.0
    %v258 = vmax.f32 %v249, 0.0
    %v259 = vpack.c.bf16 %v255, %v253
    %v260 = vpack.c.bf16 %v256, %v254
    %v261 = vpack.c.bf16 %v257, %v257
    %v262 = vpack.c.bf16 %v258, %v258
    %v263 = vld [vmem:[#allocation7] sm:$0xff]
    %v264 = vld [vmem:[#allocation7 + $0x8] sm:$0xff]
    %v265 = vld [vmem:[#allocation7 + $0x10] sm:$0xff]
    %v266 = vld [vmem:[#allocation7 + $0x18] sm:$0xff]
    %v267 = vld [vmem:[#allocation7 + $0x20] sm:$0xff]
    %v268 = vld [vmem:[#allocation7 + $0x28] sm:$0xff]
    %v269 = vld [vmem:[#allocation7 + $0x30] sm:$0xff]
    %v270 = vld [vmem:[#allocation7 + $0x38] sm:$0xff]
    %v271 = vld [vmem:[#allocation7 + $0x40] sm:$0xff]
    %v272 = vld [vmem:[#allocation7 + $0x48] sm:$0xff]
    %v273 = vld [vmem:[#allocation7 + $0x50] sm:$0xff]
    %v274 = vld [vmem:[#allocation7 + $0x58] sm:$0xff]
    %v275 = vld [vmem:[#allocation7 + $0x60] sm:$0xff]
    %v276 = vld [vmem:[#allocation7 + $0x68] sm:$0xff]
    %v277 = vld [vmem:[#allocation7 + $0x70] sm:$0xff]
    %v278 = vld [vmem:[#allocation7 + $0x78] sm:$0xff]
    %v279 = vld [vmem:[#allocation7 + $0x80] sm:$0xff]
    %v280 = vld [vmem:[#allocation7 + $0x88] sm:$0xff]
    %v281 = vld [vmem:[#allocation7 + $0x90] sm:$0xff]
    %v282 = vld [vmem:[#allocation7 + $0x98] sm:$0xff]
    %v283 = vld [vmem:[#allocation7 + $0xa0] sm:$0xff]
    %v284 = vld [vmem:[#allocation7 + $0xa8] sm:$0xff]
    %v285 = vld [vmem:[#allocation7 + $0xb0] sm:$0xff]
    %v286 = vld [vmem:[#allocation7 + $0xb8] sm:$0xff]
    %v287 = vld [vmem:[#allocation7 + $0xc0] sm:$0xff]
    %v288 = vld [vmem:[#allocation7 + $0xc8] sm:$0xff]
    %v289 = vld [vmem:[#allocation7 + $0xd0] sm:$0xff]
    %v290 = vld [vmem:[#allocation7 + $0xd8] sm:$0xff]
    %v291 = vld [vmem:[#allocation7 + $0xe0] sm:$0xff]
    %v292 = vld [vmem:[#allocation7 + $0xe8] sm:$0xff]
    %v293 = vld [vmem:[#allocation7 + $0xf0] sm:$0xff]
    %v294 = vld [vmem:[#allocation7 + $0xf8] sm:$0xff]
    %v295 = vld [vmem:[%s4] sm:$0x3]
    %v297 = vlaneseq
    %v298 = vshrl.u32 %v297, 7
    %v299 = vsub.s32 0, %v298
    %v300 = vrot.slane %v295, %v299
    %v301 = vlaneseq
    %v302 = vshrl.u32 %v301, 7
    %v303 = vsub.s32 1, %v302
    %v304 = vrot.slane %v295, %v303
    %v339 = vunpack.c.l.b16 %v263
    %v340 = vunpack.c.h.b16 %v263
    %v341 = vunpack.c.l.b16 %v264
    %v342 = vunpack.c.h.b16 %v264
    %v343 = vunpack.c.l.b16 %v265
    %v344 = vunpack.c.h.b16 %v265
    %v345 = vunpack.c.l.b16 %v266
    %v346 = vunpack.c.h.b16 %v266
    %v347 = vunpack.c.l.b16 %v267
    %v348 = vunpack.c.h.b16 %v267
    %v349 = vunpack.c.l.b16 %v268
    %v350 = vunpack.c.h.b16 %v268
    %v351 = vunpack.c.l.b16 %v269
    %v352 = vunpack.c.h.b16 %v269
    %v353 = vunpack.c.l.b16 %v270
    %v354 = vunpack.c.h.b16 %v270
    %v355 = vunpack.c.l.b16 %v271
    %v356 = vunpack.c.h.b16 %v271
    %v357 = vunpack.c.l.b16 %v272
    %v358 = vunpack.c.h.b16 %v272
    %v359 = vunpack.c.l.b16 %v273
    %v360 = vunpack.c.h.b16 %v273
    %v361 = vunpack.c.l.b16 %v274
    %v362 = vunpack.c.h.b16 %v274
    %v363 = vunpack.c.l.b16 %v275
    %v364 = vunpack.c.h.b16 %v275
    %v365 = vunpack.c.l.b16 %v276
    %v366 = vunpack.c.h.b16 %v276
    %v367 = vunpack.c.l.b16 %v277
    %v368 = vunpack.c.h.b16 %v277
    %v369 = vunpack.c.l.b16 %v278
    %v370 = vunpack.c.h.b16 %v278
    %v371 = vunpack.c.l.b16 %v279
    %v372 = vunpack.c.h.b16 %v279
    %v373 = vunpack.c.l.b16 %v280
    %v374 = vunpack.c.h.b16 %v280
    %v375 = vunpack.c.l.b16 %v281
    %v376 = vunpack.c.h.b16 %v281
    %v377 = vunpack.c.l.b16 %v282
    %v378 = vunpack.c.h.b16 %v282
    %v379 = vunpack.c.l.b16 %v283
    %v380 = vunpack.c.h.b16 %v283
    %v381 = vunpack.c.l.b16 %v284
    %v382 = vunpack.c.h.b16 %v284
    %v383 = vunpack.c.l.b16 %v285
    %v384 = vunpack.c.h.b16 %v285
    %v385 = vunpack.c.l.b16 %v286
    %v386 = vunpack.c.h.b16 %v286
    %v387 = vunpack.c.l.b16 %v287
    %v388 = vunpack.c.h.b16 %v287
    %v389 = vunpack.c.l.b16 %v288
    %v390 = vunpack.c.h.b16 %v288
    %v391 = vunpack.c.l.b16 %v289
    %v392 = vunpack.c.h.b16 %v289
    %v393 = vunpack.c.l.b16 %v290
    %v394 = vunpack.c.h.b16 %v290
    %v395 = vunpack.c.l.b16 %v291
    %v396 = vunpack.c.h.b16 %v291
    %v397 = vunpack.c.l.b16 %v292
    %v398 = vunpack.c.h.b16 %v292
    %v399 = vunpack.c.l.b16 %v293
    %v400 = vunpack.c.h.b16 %v293
    %v401 = vunpack.c.l.b16 %v294
    %v402 = vunpack.c.h.b16 %v294
    %v403 = vpack.c.b16 %v341, %v339
    %v404 = vpack.c.b16 %v342, %v340
    %v405 = vpack.c.b16 %v345, %v343
    %v406 = vpack.c.b16 %v346, %v344
    %v407 = vpack.c.b16 %v349, %v347
    %v408 = vpack.c.b16 %v350, %v348
    %v409 = vpack.c.b16 %v353, %v351
    %v410 = vpack.c.b16 %v354, %v352
    %v411 = vpack.c.b16 %v357, %v355
    %v412 = vpack.c.b16 %v358, %v356
    %v413 = vpack.c.b16 %v361, %v359
    %v414 = vpack.c.b16 %v362, %v360
    %v415 = vpack.c.b16 %v365, %v363
    %v416 = vpack.c.b16 %v366, %v364
    %v417 = vpack.c.b16 %v369, %v367
    %v418 = vpack.c.b16 %v370, %v368
    %v419 = vpack.c.b16 %v373, %v371
    %v420 = vpack.c.b16 %v374, %v372
    %v421 = vpack.c.b16 %v377, %v375
    %v422 = vpack.c.b16 %v378, %v376
    %v423 = vpack.c.b16 %v381, %v379
    %v424 = vpack.c.b16 %v382, %v380
    %v425 = vpack.c.b16 %v385, %v383
    %v426 = vpack.c.b16 %v386, %v384
    %v427 = vpack.c.b16 %v389, %v387
    %v428 = vpack.c.b16 %v390, %v388
    %v429 = vpack.c.b16 %v393, %v391
    %v430 = vpack.c.b16 %v394, %v392
    %v431 = vpack.c.b16 %v397, %v395
    %v432 = vpack.c.b16 %v398, %v396
    %v433 = vpack.c.b16 %v401, %v399
    %v434 = vpack.c.b16 %v402, %v400
    %467 = vmatprep.subr.bf16.mxu0 %v404
    %468 = vmatpush1.bf16.msra.mxu0 %v403
    %469 = vmatprep.subr.bf16.mxu0 %v406
    %470 = vmatpush1.bf16.msra.mxu0 %v405
    %471 = vmatprep.subr.bf16.mxu0 %v408
    %472 = vmatpush1.bf16.msra.mxu0 %v407
    %473 = vmatprep.subr.bf16.mxu0 %v410
    %474 = vmatpush1.bf16.msra.mxu0 %v409
    %475 = vmatprep.subr.bf16.mxu0 %v412
    %476 = vmatpush1.bf16.msra.mxu0 %v411
    %477 = vmatprep.subr.bf16.mxu0 %v414
    %478 = vmatpush1.bf16.msra.mxu0 %v413
    %479 = vmatprep.subr.bf16.mxu0 %v416
    %480 = vmatpush1.bf16.msra.mxu0 %v415
    %481 = vmatprep.subr.bf16.mxu0 %v418
    %482 = vmatpush1.bf16.msra.mxu0 %v417
    %483 = vmatprep.subr.bf16.mxu0 %v420
    %484 = vmatpush1.bf16.msra.mxu0 %v419
    %485 = vmatprep.subr.bf16.mxu0 %v422
    %486 = vmatpush1.bf16.msra.mxu0 %v421
    %487 = vmatprep.subr.bf16.mxu0 %v424
    %488 = vmatpush1.bf16.msra.mxu0 %v423
    %489 = vmatprep.subr.bf16.mxu0 %v426
    %490 = vmatpush1.bf16.msra.mxu0 %v425
    %491 = vmatprep.subr.bf16.mxu0 %v428
    %492 = vmatpush1.bf16.msra.mxu0 %v427
    %493 = vmatprep.subr.bf16.mxu0 %v430
    %494 = vmatpush1.bf16.msra.mxu0 %v429
    %495 = vmatprep.subr.bf16.mxu0 %v432
    %496 = vmatpush1.bf16.msra.mxu0 %v431
    %497 = vmatprep.subr.bf16.mxu0 %v434
    %498 = vmatpush1.bf16.msra.mxu0 %v433
    %499 = vmatprep.mubr.bf16.mxu0 %v260
    %500 = vmatmul.mubr.bf16.gmra.mrb[0].mxu0 %v259
    %v501 = vpop.f32.mrb[0].mxu0
    %v502 = vadd.f32 %v300, %v501
    %v503 = vpop.f32.mrb[0].mxu0
    %v504 = vadd.f32 %v304, %v503
    %v505 = vpop.f32.mrb[0].mxu0
    %v506 = vadd.f32 %v300, %v505
    %v507 = vpop.f32.mrb[0].mxu0
    %v508 = vadd.f32 %v304, %v507
    %509 = vmatprep.mubr.bf16.mxu0 %v262
    %510 = vmatmul.mubr.bf16.gmra.mrb[0].mxu0 %v261
    %v511 = vpop.f32.mrb[0].mxu0
    %v512 = vadd.f32 %v300, %v511
    %v513 = vpop.f32.mrb[0].mxu0
    %v514 = vadd.f32 %v304, %v513
    %v515 = vpop.f32.mrb[0].mxu0
    %v516 = vpop.f32.mrb[0].mxu0
    %517 = vdwg.mxu0
    %v518 = vmax.f32 %v502, 0.0
    %v519 = vmax.f32 %v504, 0.0
    %v520 = vmax.f32 %v506, 0.0
    %v521 = vmax.f32 %v508, 0.0
    %v522 = vmax.f32 %v512, 0.0
    %v523 = vmax.f32 %v514, 0.0
    %v524 = vpack.c.bf16 %v520, %v518
    %v525 = vpack.c.bf16 %v521, %v519
    %v526 = vpack.c.bf16 %v522, %v522
    %v527 = vpack.c.bf16 %v523, %v523
    %v528 = vld [vmem:[#allocation8] sm:$0xf]
    %v529 = vld [vmem:[#allocation8 + $0x4] sm:$0xf]
    %v530 = vld [vmem:[#allocation8 + $0x8] sm:$0xf]
    %v531 = vld [vmem:[#allocation8 + $0xc] sm:$0xf]
    %v532 = vld [vmem:[#allocation8 + $0x10] sm:$0xf]
    %v533 = vld [vmem:[#allocation8 + $0x14] sm:$0xf]
    %v534 = vld [vmem:[#allocation8 + $0x18] sm:$0xf]
    %v535 = vld [vmem:[#allocation8 + $0x1c] sm:$0xf]
    %v536 = vld [vmem:[#allocation8 + $0x20] sm:$0xf]
    %v537 = vld [vmem:[#allocation8 + $0x24] sm:$0xf]
    %v538 = vld [vmem:[#allocation8 + $0x28] sm:$0xf]
    %v539 = vld [vmem:[#allocation8 + $0x2c] sm:$0xf]
    %v540 = vld [vmem:[#allocation8 + $0x30] sm:$0xf]
    %v541 = vld [vmem:[#allocation8 + $0x34] sm:$0xf]
    %v542 = vld [vmem:[#allocation8 + $0x38] sm:$0xf]
    %v543 = vld [vmem:[#allocation8 + $0x3c] sm:$0xf]
    %v544 = vld [vmem:[#allocation8 + $0x40] sm:$0xf]
    %v545 = vld [vmem:[#allocation8 + $0x44] sm:$0xf]
    %v546 = vld [vmem:[#allocation8 + $0x48] sm:$0xf]
    %v547 = vld [vmem:[#allocation8 + $0x4c] sm:$0xf]
    %v548 = vld [vmem:[#allocation8 + $0x50] sm:$0xf]
    %v549 = vld [vmem:[#allocation8 + $0x54] sm:$0xf]
    %v550 = vld [vmem:[#allocation8 + $0x58] sm:$0xf]
    %v551 = vld [vmem:[#allocation8 + $0x5c] sm:$0xf]
    %v552 = vld [vmem:[#allocation8 + $0x60] sm:$0xf]
    %v553 = vld [vmem:[#allocation8 + $0x64] sm:$0xf]
    %v554 = vld [vmem:[#allocation8 + $0x68] sm:$0xf]
    %v555 = vld [vmem:[#allocation8 + $0x6c] sm:$0xf]
    %v556 = vld [vmem:[#allocation8 + $0x70] sm:$0xf]
    %v557 = vld [vmem:[#allocation8 + $0x74] sm:$0xf]
    %v558 = vld [vmem:[#allocation8 + $0x78] sm:$0xf]
    %v559 = vld [vmem:[#allocation8 + $0x7c] sm:$0xf]
    %v560 = vld [vmem:[%s6] sm:$0x1]
    %v562 = vlaneseq
    %v563 = vshrl.u32 %v562, 7
    %v564 = vsub.s32 0, %v563
    %v565 = vrot.slane %v560, %v564
    %v599 = vunpack.c.l.b16 %v528
    %v600 = vunpack.c.l.b16 %v529
    %v601 = vunpack.c.l.b16 %v530
    %v602 = vunpack.c.l.b16 %v531
    %v603 = vunpack.c.l.b16 %v532
    %v604 = vunpack.c.l.b16 %v533
    %v605 = vunpack.c.l.b16 %v534
    %v606 = vunpack.c.l.b16 %v535
    %v607 = vunpack.c.l.b16 %v536
    %v608 = vunpack.c.l.b16 %v537
    %v609 = vunpack.c.l.b16 %v538
    %v610 = vunpack.c.l.b16 %v539
    %v611 = vunpack.c.l.b16 %v540
    %v612 = vunpack.c.l.b16 %v541
    %v613 = vunpack.c.l.b16 %v542
    %v614 = vunpack.c.l.b16 %v543
    %v615 = vunpack.c.l.b16 %v544
    %v616 = vunpack.c.l.b16 %v545
    %v617 = vunpack.c.l.b16 %v546
    %v618 = vunpack.c.l.b16 %v547
    %v619 = vunpack.c.l.b16 %v548
    %v620 = vunpack.c.l.b16 %v549
    %v621 = vunpack.c.l.b16 %v550
    %v622 = vunpack.c.l.b16 %v551
    %v623 = vunpack.c.l.b16 %v552
    %v624 = vunpack.c.l.b16 %v553
    %v625 = vunpack.c.l.b16 %v554
    %v626 = vunpack.c.l.b16 %v555
    %v627 = vunpack.c.l.b16 %v556
    %v628 = vunpack.c.l.b16 %v557
    %v629 = vunpack.c.l.b16 %v558
    %v630 = vunpack.c.l.b16 %v559
    %v631 = vpack.c.b16 %v600, %v599
    %v632 = vpack.c.b16 %v602, %v601
    %v633 = vpack.c.b16 %v604, %v603
    %v634 = vpack.c.b16 %v606, %v605
    %v635 = vpack.c.b16 %v608, %v607
    %v636 = vpack.c.b16 %v610, %v609
    %v637 = vpack.c.b16 %v612, %v611
    %v638 = vpack.c.b16 %v614, %v613
    %v639 = vpack.c.b16 %v616, %v615
    %v640 = vpack.c.b16 %v618, %v617
    %v641 = vpack.c.b16 %v620, %v619
    %v642 = vpack.c.b16 %v622, %v621
    %v643 = vpack.c.b16 %v624, %v623
    %v644 = vpack.c.b16 %v626, %v625
    %v645 = vpack.c.b16 %v628, %v627
    %v646 = vpack.c.b16 %v630, %v629
    %663 = vmatprep.subr.bf16.mxu0 0
    %664 = vmatpush1.bf16.msra.mxu0 %v631
    %665 = vmatprep.subr.bf16.mxu0 0
    %666 = vmatpush1.bf16.msra.mxu0 %v632
    %667 = vmatprep.subr.bf16.mxu0 0
    %668 = vmatpush1.bf16.msra.mxu0 %v633
    %669 = vmatprep.subr.bf16.mxu0 0
    %670 = vmatpush1.bf16.msra.mxu0 %v634
    %671 = vmatprep.subr.bf16.mxu0 0
    %672 = vmatpush1.bf16.msra.mxu0 %v635
    %673 = vmatprep.subr.bf16.mxu0 0
    %674 = vmatpush1.bf16.msra.mxu0 %v636
    %675 = vmatprep.subr.bf16.mxu0 0
    %676 = vmatpush1.bf16.msra.mxu0 %v637
    %677 = vmatprep.subr.bf16.mxu0 0
    %678 = vmatpush1.bf16.msra.mxu0 %v638
    %679 = vmatprep.subr.bf16.mxu0 0
    %680 = vmatpush1.bf16.msra.mxu0 %v639
    %681 = vmatprep.subr.bf16.mxu0 0
    %682 = vmatpush1.bf16.msra.mxu0 %v640
    %683 = vmatprep.subr.bf16.mxu0 0
    %684 = vmatpush1.bf16.msra.mxu0 %v641
    %685 = vmatprep.subr.bf16.mxu0 0
    %686 = vmatpush1.bf16.msra.mxu0 %v642
    %687 = vmatprep.subr.bf16.mxu0 0
    %688 = vmatpush1.bf16.msra.mxu0 %v643
    %689 = vmatprep.subr.bf16.mxu0 0
    %690 = vmatpush1.bf16.msra.mxu0 %v644
    %691 = vmatprep.subr.bf16.mxu0 0
    %692 = vmatpush1.bf16.msra.mxu0 %v645
    %693 = vmatprep.subr.bf16.mxu0 0
    %694 = vmatpush1.bf16.msra.mxu0 %v646
    %695 = vmatprep.mubr.bf16.mxu0 %v525
    %696 = vmatmul.mubr.bf16.gmra.mrb[0].mxu0 %v524
    %v697 = vpop.f32.mrb[0].mxu0
    %v698 = vadd.f32 %v565, %v697
    %v699 = vpop.f32.mrb[0].mxu0
    %v700 = vpop.f32.mrb[0].mxu0
    %v701 = vadd.f32 %v565, %v700
    %v702 = vpop.f32.mrb[0].mxu0
    %703 = vmatprep.mubr.bf16.mxu0 %v527
    %704 = vmatmul.mubr.bf16.gmra.mrb[0].mxu0 %v526
    %v705 = vpop.f32.mrb[0].mxu0
    %v706 = vadd.f32 %v565, %v705
    %v707 = vpop.f32.mrb[0].mxu0
    %v708 = vpop.f32.mrb[0].mxu0
    %v709 = vpop.f32.mrb[0].mxu0
    %710 = vdwg.mxu0
    %v711 = vtanh.pop %v698
    %v712 = vtanh.pop %v701
    %v713 = vtanh.pop %v706
    %v714 = vld [vmem:[%s7] sm:$0x1]
    %v716 = vlaneseq
    %v717 = vshrl.u32 %v716, 7
    %v718 = vsub.s32 0, %v717
    %v719 = vrot.slane %v714, %v718
    %v721 = vmul.f32 %v711, %v719
    %v722 = vmul.f32 %v712, %v719
    %v723 = vmul.f32 %v713, %v719
    %v724 = vld [vmem:[%s8] sm:$0x1]
    %v726 = vlaneseq
    %v727 = vshrl.u32 %v726, 7
    %v728 = vsub.s32 0, %v727
    %v729 = vrot.slane %v724, %v728
    %v731 = vadd.f32 %v721, %v729
    %v732 = vadd.f32 %v722, %v729
    %v733 = vadd.f32 %v723, %v729
    %734 = vst [vmem:[#allocation10] sm:$0xff] %v731
    %735 = vst [vmem:[#allocation10 + $0x8] sm:$0xff] %v732
    %736 = vst [vmem:[#allocation10 + $0x10] sm:$0xff] %v733
    // Predicated region
    $region54: #{tpu_custom_call.1} parent=1 // pred_check
      _
    $region55: #{tpu_custom_call.1} parent=1 // pred_check_branch
      %738 = sbr.rel (0) target = $region57
    $region56: #{tpu_custom_call.1} parent=1 // pred_region
      %s740 = ssub.s32 384, 384
      %741 = vsyncadd [#allocation4], %s740
      %s742 = sshll.u32 [#allocation10], 4
      %s743 = int_to_ptr.vmem [resolvable:$true] %s742
      %748 = dma.vmem_to_hbm [thread:$0]  %s743, 384, %s9, [#allocation4], 128, 128, 8
    $region57: #{tpu_custom_call.1} parent=1 // pred_fallthru
      _
    // Predicated region
    $region58: #{tpu_custom_call.1} parent=1 // pred_check
      _
    $region59: #{tpu_custom_call.1} parent=1 // pred_check_branch
      %750 = sbr.rel (0) target = $region61
    $region60: #{tpu_custom_call.1} parent=1 // pred_region
      %751 = dma.done [#allocation4], 384
    $region61: #{tpu_custom_call.1} parent=1 // pred_fallthru
      _
    %752 = vsyncpa [#allocation3], 1
    %753 = vsyncpa [#allocation6], 1
    %754 = vsyncpa [#allocation9], 1
    %755 = vsyncpa [#allocation4], 1

</llo_original>
